<compile_context>
chip_gen: v7x
topology: tpu7x:2x2x1
jax: 0.10.0
libtpu: 0.0.40
codegen_flags: <defaults>
</compile_context>

<pallas_src>
import functools

import jax
import jax.numpy as jnp
from jax.experimental import pallas as pl
from jax.experimental.pallas import tpu as pltpu

_LANES = 128
_NC = 2  # leading 'parallel' grid axis: one partial-sum slab per TensorCore on v7x.


def _round_up(n: int, m: int) -> int:
    return (n + m - 1) // m * m


def _lstm_loss_kernel(o_ref, xs_ref, xm2_ref, xm1_ref, om1_ref, res_ref, acc_ref,
                      *, mse_scale, pen_scale_per_core, tiles_per_core):
    # program_id is only ever called at the top level of the kernel body.
    i = pl.program_id(1)

    @pl.when(i == 0)
    def _init():
        acc_ref[...] = jnp.zeros_like(acc_ref)

    # Steady state: per-tile upcast, squared error, VPU-only partial reduce into (8,128).
    d = o_ref[...].astype(jnp.float32) - xs_ref[...].astype(jnp.float32)
    acc_ref[...] += jnp.sum((d * d).reshape(-1, 8, _LANES), axis=0)

    @pl.when(i == tiles_per_core - 1)
    def _finalize():
        partial = acc_ref[...] * mse_scale                       # (8, 128), already scaled

        # Penalty term: only the last two timesteps.  Each core adds 1/NC of it, so
        # the wrapper-side sum over the NC partial slabs yields the full penalty
        # without any core-id branch inside this nested body.
        x_m2 = xm2_ref[...].astype(jnp.float32)                  # (B, F)
        x_m1 = xm1_ref[...].astype(jnp.float32)
        o_m1 = om1_ref[...].astype(jnp.float32)
        x_diff = x_m2 - x_m1
        out_diff = x_m2 - o_m1
        pen = jnp.tanh(jnp.maximum(-x_diff * out_diff, 0.0))     # relu (VPU) + tanh (EUP)
        pen_term = pen_scale_per_core * jnp.sum(pen)

        rr = jax.lax.broadcasted_iota(jnp.int32, partial.shape, 0)
        cc = jax.lax.broadcasted_iota(jnp.int32, partial.shape, 1)
        res_ref[...] = (partial + jnp.where((rr == 0) & (cc == 0), pen_term, 0.0))[None]


def _lane_dense(a, padded_rows):
    flat = a.reshape(-1)
    pad = padded_rows * _LANES - flat.shape[0]
    if pad:
        flat = jnp.pad(flat, (0, pad))
    return flat.reshape(padded_rows, _LANES)


@functools.partial(jax.jit, static_argnames=("alpha", "beta", "block_rows"))
def lstm_loss(output, x, alpha: float = 1.0, beta: float = 1.0, block_rows: int = 1024):
    """Pallas implementation of LSTMLoss.forward -> scalar float32."""
    B, Tm1, F = output.shape
    n_mse = B * Tm1 * F
    mse_scale = float(alpha) / float(n_mse)
    pen_scale_per_core = float(beta) / float(B * F) / float(_NC)

    # --- static tiling arithmetic (pure Python ints) -------------------------------
    rows = (n_mse + _LANES - 1) // _LANES
    rows_per_core = (rows + _NC - 1) // _NC
    blk = max(8, min(int(block_rows), _round_up(rows_per_core, 8)))
    tiles_per_core = (rows + _NC * blk - 1) // (_NC * blk)
    blk = _round_up(-(-rows // (_NC * tiles_per_core)), 8)   # shrink block to cut padding
    padded_rows = _NC * tiles_per_core * blk

    # --- lane-dense, pre-shifted operands (layout plumbing, not compute) ------------
    o2d = _lane_dense(output, padded_rows)
    xs2d = _lane_dense(x[:, 1:, :], padded_rows)     # drops the unused t=0 slab of x
    x_m2 = x[:, -2, :]                               # (B, F) tails for the penalty term
    x_m1 = x[:, -1, :]
    o_m1 = output[:, -1, :]

    kernel = functools.partial(_lstm_loss_kernel, mse_scale=mse_scale,
                               pen_scale_per_core=pen_scale_per_core,
                               tiles_per_core=tiles_per_core)

    row_spec = pl.BlockSpec((blk, _LANES), lambda c, i: (c * tiles_per_core + i, 0))
    tail_spec = pl.BlockSpec((B, F), lambda c, i: (0, 0))    # resident across the grid

    partials = pl.pallas_call(
        kernel,
        out_shape=jax.ShapeDtypeStruct((_NC, 8, _LANES), jnp.float32),
        grid_spec=pltpu.PrefetchScalarGridSpec(
            num_scalar_prefetch=0,
            grid=(_NC, tiles_per_core),
            in_specs=[row_spec, row_spec, tail_spec, tail_spec, tail_spec],
            out_specs=pl.BlockSpec((1, 8, _LANES), lambda c, i: (c, 0, 0)),
            scratch_shapes=[pltpu.VMEM((8, _LANES), jnp.float32)],
        ),
        compiler_params=pltpu.CompilerParams(
            dimension_semantics=("parallel", "arbitrary")),
    )(o2d, xs2d, x_m2, x_m1, o_m1)

    # Per-core partial slabs (already scaled, penalty split evenly) -> scalar loss.
    return jnp.sum(partials)


def lstm_loss_ref(output, x, alpha: float = 1.0, beta: float = 1.0):
    """Pure-JAX reference mirroring the PyTorch forward exactly."""
    loss_value = jnp.mean((output - x[:, 1:]) ** 2) * alpha
    x_diff = x[:, -2:-1] - x[:, -1:]
    output_diff = x[:, -2:-1] - output[:, -1:]
    feature_penalties = jnp.mean(
        jnp.tanh(jax.nn.relu(-x_diff * output_diff)), axis=0
    ).squeeze() * beta
    penalty_value = jnp.mean(feature_penalties)
    return loss_value + penalty_value


if __name__ == "__main__":
    # LSTMLoss has no learnable parameters (MSELoss / ReLU / Tanh are stateless);
    # only alpha/beta hyperparameters, set deterministically here.
    alpha, beta = 1.0, 1.0

    B, T, F = 2, 8, 32  # batch=2, seq=8, hidden/features=32
    key = jax.random.PRNGKey(0)
    k_out, k_x = jax.random.split(key)
    x = jax.random.normal(k_x, (B, T, F), dtype=jnp.float32)
    output = jax.random.normal(k_out, (B, T - 1, F), dtype=jnp.float32)

    got = jax.block_until_ready(lstm_loss(output, x, alpha=alpha, beta=beta))
    want = jax.block_until_ready(lstm_loss_ref(output, x, alpha, beta))

    assert jnp.allclose(got, want, atol=1e-5, rtol=1e-5), (got, want)
    print("KERNEL_OK")
</pallas_src>

<mosaic_0001>
module attributes {stable_mosaic.version = 11 : i64} {
  func.func @_lstm_loss_kernel(%arg0: i32, %arg1: i32, %arg2: memref<8x128xf32, #tpu.memory_space<vmem>>, %arg3: memref<8x128xf32, #tpu.memory_space<vmem>>, %arg4: memref<2x32xf32, #tpu.memory_space<vmem>>, %arg5: memref<2x32xf32, #tpu.memory_space<vmem>>, %arg6: memref<2x32xf32, #tpu.memory_space<vmem>>, %arg7: memref<1x8x128xf32, #tpu.memory_space<vmem>>, %arg8: memref<8x128xf32, #tpu.memory_space<vmem>>) attributes {dimension_semantics = [#tpu.dimension_semantics<parallel>, #tpu.dimension_semantics<arbitrary>], iteration_bounds = array<i64: 2, 1>, scalar_prefetch = 0 : i64, scratch_operands = 1 : i64, tpu.core_type = #tpu.core_type<tc>, window_params = [{transform_indices = @transform_0, window_bounds = array<i64: 8, 128>}, {transform_indices = @transform_1, window_bounds = array<i64: 8, 128>}, {pipeline_mode = #tpu.pipeline_mode<synchronous>, transform_indices = @transform_2, window_bounds = array<i64: 2, 32>}, {pipeline_mode = #tpu.pipeline_mode<synchronous>, transform_indices = @transform_3, window_bounds = array<i64: 2, 32>}, {pipeline_mode = #tpu.pipeline_mode<synchronous>, transform_indices = @transform_4, window_bounds = array<i64: 2, 32>}, {transform_indices = @transform_5, window_bounds = array<i64: 1, 8, 128>}]} {
    %c0_i32 = arith.constant 0 : i32
    %0 = arith.cmpi eq, %arg1, %c0_i32 : i32
    %1 = arith.extui %0 : i1 to i32
    %c0_i32_0 = arith.constant 0 : i32
    %2 = arith.cmpi ne, %1, %c0_i32_0 : i32
    scf.if %2 {
      %cst_10 = arith.constant 0.000000e+00 : f32
      %15 = vector.broadcast %cst_10 : f32 to vector<8x128xf32>
      %c0_11 = arith.constant 0 : index
      %c0_12 = arith.constant 0 : index
      %16 = vector.load %arg8[%c0_11, %c0_12] : memref<8x128xf32, #tpu.memory_space<vmem>>, vector<8x128xf32>
      tpu.vector_store %arg8[%c0_11, %c0_12], %15 {strides = array<i32>} : memref<8x128xf32, #tpu.memory_space<vmem>>, vector<8x128xf32>,
    } else {
    }
    %c0 = arith.constant 0 : index
    %c0_1 = arith.constant 0 : index
    %3 = vector.load %arg2[%c0, %c0_1] : memref<8x128xf32, #tpu.memory_space<vmem>>, vector<8x128xf32>
    %c0_2 = arith.constant 0 : index
    %c0_3 = arith.constant 0 : index
    %4 = vector.load %arg3[%c0_2, %c0_3] : memref<8x128xf32, #tpu.memory_space<vmem>>, vector<8x128xf32>
    %5 = arith.subf %3, %4 : vector<8x128xf32>
    %c0_4 = arith.constant 0 : index
    %c0_5 = arith.constant 0 : index
    %6 = vector.load %arg8[%c0_4, %c0_5] : memref<8x128xf32, #tpu.memory_space<vmem>>, vector<8x128xf32>
    %7 = arith.mulf %5, %5 : vector<8x128xf32>
    %8 = vector.shape_cast %7 : vector<8x128xf32> to vector<1x8x128xf32>
    %cst = arith.constant dense<0.000000e+00> : vector<8x128xf32>
    %9 = vector.multi_reduction <add>, %8, %cst [0] : vector<1x8x128xf32> to vector<8x128xf32>
    %10 = arith.addf %6, %9 : vector<8x128xf32>
    %c0_6 = arith.constant 0 : index
    %c0_7 = arith.constant 0 : index
    %11 = vector.load %arg8[%c0_6, %c0_7] : memref<8x128xf32, #tpu.memory_space<vmem>>, vector<8x128xf32>
    tpu.vector_store %arg8[%c0_6, %c0_7], %10 {strides = array<i32>} : memref<8x128xf32, #tpu.memory_space<vmem>>, vector<8x128xf32>,
    %c0_i32_8 = arith.constant 0 : i32
    %12 = arith.cmpi eq, %arg1, %c0_i32_8 : i32
    %13 = arith.extui %12 : i1 to i32
    %c0_i32_9 = arith.constant 0 : i32
    %14 = arith.cmpi ne, %13, %c0_i32_9 : i32
    scf.if %14 {
      %c0_10 = arith.constant 0 : index
      %c0_11 = arith.constant 0 : index
      %15 = vector.load %arg8[%c0_10, %c0_11] : memref<8x128xf32, #tpu.memory_space<vmem>>, vector<8x128xf32>
      %cst_12 = arith.constant 0.00223214296 : f32
      %16 = vector.broadcast %cst_12 : f32 to vector<8x128xf32>
      %17 = arith.mulf %15, %16 : vector<8x128xf32>
      %c0_13 = arith.constant 0 : index
      %c0_14 = arith.constant 0 : index
      %18 = vector.load %arg4[%c0_13, %c0_14] : memref<2x32xf32, #tpu.memory_space<vmem>>, vector<2x32xf32>
      %c0_15 = arith.constant 0 : index
      %c0_16 = arith.constant 0 : index
      %19 = vector.load %arg5[%c0_15, %c0_16] : memref<2x32xf32, #tpu.memory_space<vmem>>, vector<2x32xf32>
      %c0_17 = arith.constant 0 : index
      %c0_18 = arith.constant 0 : index
      %20 = vector.load %arg6[%c0_17, %c0_18] : memref<2x32xf32, #tpu.memory_space<vmem>>, vector<2x32xf32>
      %21 = arith.subf %18, %19 : vector<2x32xf32>
      %22 = arith.subf %18, %20 : vector<2x32xf32>
      %cst_19 = arith.constant 0.000000e+00 : f32
      %23 = vector.broadcast %cst_19 : f32 to vector<2x32xf32>
      %24 = arith.subf %23, %21 : vector<2x32xf32>
      %25 = arith.mulf %24, %22 : vector<2x32xf32>
      %cst_20 = arith.constant 0.000000e+00 : f32
      %26 = vector.broadcast %cst_20 : f32 to vector<2x32xf32>
      %27 = arith.maximumf %25, %26 : vector<2x32xf32>
      %28 = math.tanh %27 : vector<2x32xf32>
      %29 = vector.shape_cast %28 : vector<2x32xf32> to vector<1x2x32xf32>
      %cst_21 = arith.constant dense<0.000000e+00> : vector<1xf32>
      %30 = vector.multi_reduction <add>, %29, %cst_21 [1, 2] : vector<1x2x32xf32> to vector<1xf32>
      %31 = vector.shape_cast %30 : vector<1xf32> to vector<1x1x1xf32>
      %32 = vector.extract %31[0, 0, 0] : f32 from vector<1x1x1xf32>
      %cst_22 = arith.constant 7.812500e-03 : f32
      %33 = arith.mulf %cst_22, %32 : f32
      %34 = tpu.iota {dimensions = array<i32: 0>} : vector<8x128xi32>
      %35 = tpu.iota {dimensions = array<i32: 1>} : vector<8x128xi32>
      %c0_i32_23 = arith.constant 0 : i32
      %36 = vector.broadcast %c0_i32_23 : i32 to vector<8x128xi32>
      %37 = arith.cmpi eq, %34, %36 : vector<8x128xi32>
      %c0_i32_24 = arith.constant 0 : i32
      %38 = vector.broadcast %c0_i32_24 : i32 to vector<8x128xi32>
      %39 = arith.cmpi eq, %35, %38 : vector<8x128xi32>
      %40 = arith.andi %37, %39 : vector<8x128xi1>
      %cst_25 = arith.constant 0.000000e+00 : f32
      %41 = vector.broadcast %33 : f32 to vector<8x128xf32>
      %42 = vector.broadcast %cst_25 : f32 to vector<8x128xf32>
      %43 = arith.select %40, %41, %42 : vector<8x128xi1>, vector<8x128xf32>
      %44 = arith.addf %17, %43 : vector<8x128xf32>
      %45 = vector.shape_cast %44 : vector<8x128xf32> to vector<1x8x128xf32>
      %c0_26 = arith.constant 0 : index
      %c0_27 = arith.constant 0 : index
      %c0_28 = arith.constant 0 : index
      %46 = vector.load %arg7[%c0_26, %c0_27, %c0_28] : memref<1x8x128xf32, #tpu.memory_space<vmem>>, vector<1x8x128xf32>
      tpu.vector_store %arg7[%c0_26, %c0_27, %c0_28], %45 {strides = array<i32>} : memref<1x8x128xf32, #tpu.memory_space<vmem>>, vector<1x8x128xf32>,
    } else {
    }
    return
  }
  func.func @transform_0(%arg0: i32, %arg1: i32) -> (i32, i32) {
    %c1_i32 = arith.constant 1 : i32
    %0 = arith.muli %arg0, %c1_i32 : i32
    %1 = arith.addi %0, %arg1 : i32
    %c0_i32 = arith.constant 0 : i32
    %c0_i32_0 = arith.constant 0 : i32
    return %1, %c0_i32 : i32, i32
  }
  func.func @transform_1(%arg0: i32, %arg1: i32) -> (i32, i32) {
    %c1_i32 = arith.constant 1 : i32
    %0 = arith.muli %arg0, %c1_i32 : i32
    %1 = arith.addi %0, %arg1 : i32
    %c0_i32 = arith.constant 0 : i32
    %c0_i32_0 = arith.constant 0 : i32
    return %1, %c0_i32 : i32, i32
  }
  func.func @transform_2(%arg0: i32, %arg1: i32) -> (i32, i32) {
    %c0_i32 = arith.constant 0 : i32
    %c0_i32_0 = arith.constant 0 : i32
    %c0_i32_1 = arith.constant 0 : i32
    return %c0_i32, %c0_i32_0 : i32, i32
  }
  func.func @transform_3(%arg0: i32, %arg1: i32) -> (i32, i32) {
    %c0_i32 = arith.constant 0 : i32
    %c0_i32_0 = arith.constant 0 : i32
    %c0_i32_1 = arith.constant 0 : i32
    return %c0_i32, %c0_i32_0 : i32, i32
  }
  func.func @transform_4(%arg0: i32, %arg1: i32) -> (i32, i32) {
    %c0_i32 = arith.constant 0 : i32
    %c0_i32_0 = arith.constant 0 : i32
    %c0_i32_1 = arith.constant 0 : i32
    return %c0_i32, %c0_i32_0 : i32, i32
  }
  func.func @transform_5(%arg0: i32, %arg1: i32) -> (i32, i32, i32) {
    %c0_i32 = arith.constant 0 : i32
    %c0_i32_0 = arith.constant 0 : i32
    %c0_i32_1 = arith.constant 0 : i32
    return %arg0, %c0_i32, %c0_i32_0 : i32, i32, i32
  }
}

</mosaic_0001>

<llo_original>
// kernel: lstm_loss.1
$region0: #{lstm_loss.1}
  #allocation0 [shape = 'u32[]', space=smem, size = 0x4, offset = 0x4, fixed_abs, tag = 'smem constant byte address 0x4 - core index']
  #allocation1 [shape = 'u32[144,128]{1,0:T(1,128)}', space=vmem, size = 0x12000, scoped, tag = 'internal scratch']
  #allocation2 [shape = 'f32[8,128]{1,0:T(8,128)}', space=vmem, size = 0x1000, scoped, tag = 'scratch operand']
  %s0 = inlined_call_operand.vmem [shape: f32[16,128], index: 0, kind: input, shape index: {}]
  %s1 = inlined_call_operand.vmem [shape: f32[16,128], index: 1, kind: input, shape index: {}]
  %s2 = inlined_call_operand.vmem [shape: f32[2,32], index: 2, kind: input, shape index: {}]
  %s3 = inlined_call_operand.vmem [shape: f32[2,32], index: 3, kind: input, shape index: {}]
  %s4 = inlined_call_operand.vmem [shape: f32[2,32], index: 4, kind: input, shape index: {}]
  %s5 = inlined_call_operand.vmem [shape: f32[2,8,128], index: 5, kind: output, shape index: {}]
  %s6 = sld [smem:[#allocation0]]
  $region61: #{lstm_loss.1} parent=0
    _
  %s8 = ssub.s32 1, %s6
  %s9 = scalar_select 0, %s8, %s6
  loop: start=0, step=1, limit=4
  $region2: #{lstm_loss.1} parent=0 // loop_pre_header
    _
  $region3: #{lstm_loss.1} parent=0 // loop_header
    %s11 = sphi 0, %s15
    %p12 = scmp.ge.s32.totalorder %s11, 4
    %s18 = sphi 0, %s30
    %s19 = sphi 0, %s26
    %s20 = sphi 0, %s18
    %s21 = sphi 0, %s19
    %s22 = sphi 0, %s20
    %s23 = sphi 0, %s21
    %s35 = sphi 0, %s37
    %s38 = sphi 0, %s35
    %s39 = sphi 0, %s38
    %s55 = sphi 0, %s39
    %s63 = sphi 0, %s65
    %s66 = sphi 0, %s63
    %s67 = sphi 0, %s66
    %s83 = sphi 0, %s67
    %s87 = sphi 0, %s87
    %s89 = sphi 0, %s87
    %s90 = sphi 0, %s89
    %s104 = sphi 0, %s90
    %s108 = sphi 0, %s108
    %s110 = sphi 0, %s108
    %s111 = sphi 0, %s110
    %s125 = sphi 0, %s111
    %s129 = sphi 0, %s129
    %s131 = sphi 0, %s129
    %s132 = sphi 0, %s131
    %s146 = sphi 0, %s132
    %s152 = sphi 0, %s154
    %s155 = sphi 0, %s152
    %s156 = sphi 0, %s155
    %s172 = sphi 0, %s156
  $region4: #{lstm_loss.1} parent=0 // loop_header_branch
    %14 = sbr.rel (%p12) target = $region8
  $region5: #{lstm_loss.1} parent=0 // loop_body
    %s16 = ssub.s32 %s11, 1
    %s17 = ssub.s32 %s11, 2
    %s24 = sadd.s32 1, %s19
    %p25 = scmp.ge.s32.totalorder %s24, 1
    %s26 = scalar_select %p25, 0, %s24
    %s27 = sadd.s32 1, %s18
    %s28 = scalar_select %p25, %s27, %s18
    %p29 = scmp.ge.s32.totalorder %s28, 2
    %s30 = scalar_select %p29, 0, %s28
    %s31 = sadd.s32 %s18, %s19
    %s32 = sadd.s32 %s30, %s26
    %s33 = ssub.s32 %s31, %s32
    %p34 = scmp.eq.s32.totalorder %s33, 0
    %s36 = sadd.s32 %s35, 1
    %s37 = scalar_select %p34, %s35, %s36
    %p40 = pneg %p34
    %p41 = scmp.eq.s32.totalorder %s11, 1
    %p42 = por %p40, %p41
    %p43 = scmp.ne.s32.totalorder %s35, %s38
    %p44 = scmp.eq.s32.totalorder %s11, 0
    %p45 = por %p43, %p44
    %p46 = scmp.ne.s32.totalorder %s35, %s38
    %p47 = scmp.eq.s32.totalorder %s16, 1
    %p48 = por %p46, %p47
    %p49 = scmp.ne.s32.totalorder %s38, %s39
    %p50 = scmp.eq.s32.totalorder %s16, 0
    %p51 = por %p49, %p50
    %p52 = scmp.ne.s32.totalorder %s38, %s39
    %p53 = scmp.eq.s32.totalorder %s17, 1
    %p54 = por %p52, %p53
    %p56 = scmp.ne.s32.totalorder %s39, %s55
    %p57 = scmp.eq.s32.totalorder %s17, 0
    %p58 = por %p56, %p57
    %s59 = sadd.s32 %s18, %s19
    %s60 = sadd.s32 %s30, %s26
    %s61 = ssub.s32 %s59, %s60
    %p62 = scmp.eq.s32.totalorder %s61, 0
    %s64 = sadd.s32 %s63, 1
    %s65 = scalar_select %p62, %s63, %s64
    %p68 = pneg %p62
    %p69 = scmp.eq.s32.totalorder %s11, 1
    %p70 = por %p68, %p69
    %p71 = scmp.ne.s32.totalorder %s63, %s66
    %p72 = scmp.eq.s32.totalorder %s11, 0
    %p73 = por %p71, %p72
    %p74 = scmp.ne.s32.totalorder %s63, %s66
    %p75 = scmp.eq.s32.totalorder %s16, 1
    %p76 = por %p74, %p75
    %p77 = scmp.ne.s32.totalorder %s66, %s67
    %p78 = scmp.eq.s32.totalorder %s16, 0
    %p79 = por %p77, %p78
    %p80 = scmp.ne.s32.totalorder %s66, %s67
    %p81 = scmp.eq.s32.totalorder %s17, 1
    %p82 = por %p80, %p81
    %p84 = scmp.ne.s32.totalorder %s67, %s83
    %p85 = scmp.eq.s32.totalorder %s17, 0
    %p86 = por %p84, %p85
    %s88 = sadd.s32 %s87, 1
    %p91 = scmp.eq.s32.totalorder %s11, 1
    %p92 = scmp.ne.s32.totalorder %s87, %s89
    %p93 = scmp.eq.s32.totalorder %s11, 0
    %p94 = por %p92, %p93
    %p95 = scmp.ne.s32.totalorder %s87, %s89
    %p96 = scmp.eq.s32.totalorder %s16, 1
    %p97 = por %p95, %p96
    %p98 = scmp.ne.s32.totalorder %s89, %s90
    %p99 = scmp.eq.s32.totalorder %s16, 0
    %p100 = por %p98, %p99
    %p101 = scmp.ne.s32.totalorder %s89, %s90
    %p102 = scmp.eq.s32.totalorder %s17, 1
    %p103 = por %p101, %p102
    %p105 = scmp.ne.s32.totalorder %s90, %s104
    %p106 = scmp.eq.s32.totalorder %s17, 0
    %p107 = por %p105, %p106
    %s109 = sadd.s32 %s108, 1
    %p112 = scmp.eq.s32.totalorder %s11, 1
    %p113 = scmp.ne.s32.totalorder %s108, %s110
    %p114 = scmp.eq.s32.totalorder %s11, 0
    %p115 = por %p113, %p114
    %p116 = scmp.ne.s32.totalorder %s108, %s110
    %p117 = scmp.eq.s32.totalorder %s16, 1
    %p118 = por %p116, %p117
    %p119 = scmp.ne.s32.totalorder %s110, %s111
    %p120 = scmp.eq.s32.totalorder %s16, 0
    %p121 = por %p119, %p120
    %p122 = scmp.ne.s32.totalorder %s110, %s111
    %p123 = scmp.eq.s32.totalorder %s17, 1
    %p124 = por %p122, %p123
    %p126 = scmp.ne.s32.totalorder %s111, %s125
    %p127 = scmp.eq.s32.totalorder %s17, 0
    %p128 = por %p126, %p127
    %s130 = sadd.s32 %s129, 1
    %p133 = scmp.eq.s32.totalorder %s11, 1
    %p134 = scmp.ne.s32.totalorder %s129, %s131
    %p135 = scmp.eq.s32.totalorder %s11, 0
    %p136 = por %p134, %p135
    %p137 = scmp.ne.s32.totalorder %s129, %s131
    %p138 = scmp.eq.s32.totalorder %s16, 1
    %p139 = por %p137, %p138
    %p140 = scmp.ne.s32.totalorder %s131, %s132
    %p141 = scmp.eq.s32.totalorder %s16, 0
    %p142 = por %p140, %p141
    %p143 = scmp.ne.s32.totalorder %s131, %s132
    %p144 = scmp.eq.s32.totalorder %s17, 1
    %p145 = por %p143, %p144
    %p147 = scmp.ne.s32.totalorder %s132, %s146
    %p148 = scmp.eq.s32.totalorder %s17, 0
    %p149 = por %p147, %p148
    %s150 = ssub.s32 %s18, %s30
    %p151 = scmp.eq.s32.totalorder %s150, 0
    %s153 = sadd.s32 %s152, 1
    %s154 = scalar_select %p151, %s152, %s153
    %p157 = pneg %p151
    %p158 = scmp.eq.s32.totalorder %s11, 1
    %p159 = por %p157, %p158
    %p160 = scmp.ne.s32.totalorder %s152, %s155
    %p161 = scmp.eq.s32.totalorder %s11, 0
    %p162 = por %p160, %p161
    %p163 = scmp.ne.s32.totalorder %s152, %s155
    %p164 = scmp.eq.s32.totalorder %s16, 1
    %p165 = por %p163, %p164
    %p166 = scmp.ne.s32.totalorder %s155, %s156
    %p167 = scmp.eq.s32.totalorder %s16, 0
    %p168 = por %p166, %p167
    %p169 = scmp.ne.s32.totalorder %s155, %s156
    %p170 = scmp.eq.s32.totalorder %s17, 1
    %p171 = por %p169, %p170
    %p173 = scmp.ne.s32.totalorder %s156, %s172
    %p174 = scmp.eq.s32.totalorder %s17, 0
    %p175 = por %p173, %p174
    %p176 = scmp.le.s32.totalorder 1, %s11
    %p177 = scmp.lt.s32.totalorder %s11, 3
    %p178 = pnand %p176, %p177
    %p179 = pneg %p178
    // Predicated region
    $region9: #{lstm_loss.1} parent=5 // pred_check
      _
    $region10: #{lstm_loss.1} parent=5 // pred_check_branch
      %181 = sbr.rel (%p178) target = $region12
    $region11: #{lstm_loss.1} parent=5 // pred_region
      %s182 = ssub.s32 %s11, 1
      // Predicated region
      $region13: #{lstm_loss.1} parent=11 // pred_check
        %p183 = pneg %p100
      $region14: #{lstm_loss.1} parent=11 // pred_check_branch
        %185 = sbr.rel (%p183) target = $region16
      $region15: #{lstm_loss.1} parent=11 // pred_region
        _
      $region16: #{lstm_loss.1} parent=11 // pred_fallthru
        _
      // Predicated region
      $region17: #{lstm_loss.1} parent=11 // pred_check
        %p186 = pneg %p121
      $region18: #{lstm_loss.1} parent=11 // pred_check_branch
        %188 = sbr.rel (%p186) target = $region20
      $region19: #{lstm_loss.1} parent=11 // pred_region
        _
      $region20: #{lstm_loss.1} parent=11 // pred_fallthru
        _
      // Predicated region
      $region21: #{lstm_loss.1} parent=11 // pred_check
        %p189 = pneg %p142
      $region22: #{lstm_loss.1} parent=11 // pred_check_branch
        %191 = sbr.rel (%p189) target = $region24
      $region23: #{lstm_loss.1} parent=11 // pred_region
        _
      $region24: #{lstm_loss.1} parent=11 // pred_fallthru
        _
    $region12: #{lstm_loss.1} parent=5 // pred_fallthru
      _
    %p192 = scmp.lt.s32.totalorder %s11, 2
    // Predicated region
    $region25: #{lstm_loss.1} parent=5 // pred_check
      %p193 = pneg %p192
    $region26: #{lstm_loss.1} parent=5 // pred_check_branch
      %195 = sbr.rel (%p193) target = $region28
    $region27: #{lstm_loss.1} parent=5 // pred_region
      // Predicated region
      $region29: #{lstm_loss.1} parent=27 // pred_check
        %p196 = pneg %p45
      $region30: #{lstm_loss.1} parent=27 // pred_check_branch
        %198 = sbr.rel (%p196) target = $region32
      $region31: #{lstm_loss.1} parent=27 // pred_region
        %s199 = sadd.s32 %s18, %s19
        %p200 = scmp.lt.s32.totalorder %s199, 1
        %s201 = scalar_select %p200, %s199, 1
        %s202 = smul.addr %s201, 8
        %s203 = scalar_lea.vmem %s0, %s202
        %s204 = sadd.s32 %s18, %s19
      $region32: #{lstm_loss.1} parent=27 // pred_fallthru
        _
      // Predicated region
      $region33: #{lstm_loss.1} parent=27 // pred_check
        %p205 = pneg %p73
      $region34: #{lstm_loss.1} parent=27 // pred_check_branch
        %207 = sbr.rel (%p205) target = $region36
      $region35: #{lstm_loss.1} parent=27 // pred_region
        %s208 = sadd.s32 %s18, %s19
        %p209 = scmp.lt.s32.totalorder %s208, 1
        %s210 = scalar_select %p209, %s208, 1
        %s211 = smul.addr %s210, 8
        %s212 = scalar_lea.vmem %s1, %s211
        %s213 = sadd.s32 %s18, %s19
      $region36: #{lstm_loss.1} parent=27 // pred_fallthru
        _
    $region28: #{lstm_loss.1} parent=5 // pred_fallthru
      _
    %p214 = scmp.le.s32.totalorder 1, %s11
    %p215 = scmp.lt.s32.totalorder %s11, 3
    %p216 = pnand %p214, %p215
    %p217 = pneg %p216
    // Predicated region
    $region37: #{lstm_loss.1} parent=5 // pred_check
      _
    $region38: #{lstm_loss.1} parent=5 // pred_check_branch
      %219 = sbr.rel (%p216) target = $region40
    $region39: #{lstm_loss.1} parent=5 // pred_region
      %s220 = ssub.s32 %s11, 1
      %s221 = sadd.s32 %s20, %s21
      %p222 = scmp.lt.s32.totalorder %s221, 1
      %s223 = scalar_select %p222, %s221, 1
      %s224 = smul.addr %s223, 8
      %s225 = scalar_lea.vmem %s0, %s224
      %p226 = pneg %p51
      %p227 = pneg %p48
      %s228 = sadd.s32 %s20, %s21
      %p229 = scmp.lt.s32.totalorder %s228, 1
      %s230 = scalar_select %p229, %s228, 1
      %s231 = smul.addr %s230, 8
      %s232 = scalar_lea.vmem %s1, %s231
      %p233 = pneg %p79
      %p234 = pneg %p76
      %p235 = pneg %p100
      %p236 = pneg %p97
      %p237 = pneg %p121
      %p238 = pneg %p118
      %p239 = pneg %p142
      %p240 = pneg %p139
      %p241 = pneg %p168
      %p242 = pneg %p165
      %p243 = scmp.lt.s32.totalorder %s20, 1
      %s244 = scalar_select %p243, %s20, 1
      %s245 = smul.addr %s244, 8
      %s246 = scalar_lea.vmem %s5, %s245
      %s247 = sadd.s32 %s20, %s21
      %p248 = scmp.lt.s32.totalorder %s247, 1
      %s249 = scalar_select %p248, %s247, 1
      %s250 = smul.addr %s249, 8
      %s251 = scalar_lea.vmem %s0, %s250
      %s252 = sadd.s32 %s20, %s21
      %s253 = sadd.s32 %s20, %s21
      %p254 = scmp.lt.s32.totalorder %s253, 1
      %s255 = scalar_select %p254, %s253, 1
      %s256 = smul.addr %s255, 8
      %s257 = scalar_lea.vmem %s1, %s256
      %s258 = sadd.s32 %s20, %s21
      %p259 = scmp.lt.s32.totalorder %s20, 1
      %s260 = scalar_select %p259, %s20, 1
      %s261 = smul.addr %s260, 8
      %s262 = scalar_lea.vmem %s5, %s261
      %p263 = scmp.eq.s32.totalorder %s21, 0
      // Predicated region
      $region41: #{lstm_loss.1} parent=39 // pred_check
        %p264 = pneg %p263
      $region42: #{lstm_loss.1} parent=39 // pred_check_branch
        %266 = sbr.rel (%p264) target = $region44
      $region43: #{lstm_loss.1} parent=39 // pred_region
        %267 = vst [vmem:[#allocation2] sm:$0xff] 0.0
      $region44: #{lstm_loss.1} parent=39 // pred_fallthru
        _
      %v268 = vld [vmem:[%s251] sm:$0xff]
      %v269 = vld [vmem:[%s257] sm:$0xff]
      %v270 = vsub.f32 %v268, %v269
      %v271 = vld [vmem:[#allocation2] sm:$0xff]
      %v272 = vmul.f32 %v270, %v270
      %v273 = vadd.f32 %v272, 0.0
      %v274 = vadd.f32 %v271, %v273
      %275 = vst [vmem:[#allocation2] sm:$0xff] %v274
      // Predicated region
      $region45: #{lstm_loss.1} parent=39 // pred_check
        %p276 = pneg %p263
      $region46: #{lstm_loss.1} parent=39 // pred_check_branch
        %278 = sbr.rel (%p276) target = $region48
      $region47: #{lstm_loss.1} parent=39 // pred_region
        %v279 = vld [vmem:[#allocation2] sm:$0xff]
        %v280 = vmul.f32 %v279, 0.002232143
        %v281 = vld [vmem:[%s2] sm:$0x3]
        %v282 = vld [vmem:[%s3] sm:$0x3]
        %v283 = vld [vmem:[%s4] sm:$0x3]
        %v284 = vsub.f32 %v281, %v282
        %v285 = vsub.f32 %v281, %v283
        %v286 = vsub.f32 0.0, %v284
        %v287 = vmul.f32 %v286, %v285
        %v288 = vmax.f32 %v287, 0.0
        %v289 = vtanh.pop %v288
        %vm290 = vcmask 254976
        %v291 = vsel %vm290, %v289, 0.0
        %292 = vadd.xlane.f32.xlu0 %v291
        %v293 = vpop.xlane.xlu0 %292
        %v294 = vrot.slane %v293, 4
        %v295 = vadd.f32 %v293, %v294
        %v296 = vrot.slane %v295, 2
        %v297 = vadd.f32 %v295, %v296
        %v298 = vrot.slane %v297, 1
        %v299 = vadd.f32 %v297, %v298
        %s300 = vtos %v299
        %s301 = smul.f32 %s300, 0.0078125
        %v302 = vlaneseq
        %v303 = vshrl.u32 %v302, 7
        %v304 = vlaneseq
        %v305 = vand.u32 %v304, 127
        %vm306 = vcmp.eq.s32.totalorder %v303, 0
        %vm307 = vcmp.eq.s32.totalorder %v305, 0
        %vm308 = vmand %vm306, %vm307
        %v309 = vstv %s301
        %v310 = vsel %vm308, %v309, 0.0
        %v311 = vadd.f32 %v280, %v310
        %312 = vst [vmem:[%s262] sm:$0xff] %v311
      $region48: #{lstm_loss.1} parent=39 // pred_fallthru
        _
      %p313 = scmp.lt.s32.totalorder %s20, 1
      %s314 = scalar_select %p313, %s20, 1
      %s315 = smul.addr %s314, 8
      %s316 = scalar_lea.vmem %s5, %s315
      // Predicated region
      $region49: #{lstm_loss.1} parent=39 // pred_check
        %p317 = pneg %p165
      $region50: #{lstm_loss.1} parent=39 // pred_check_branch
        %319 = sbr.rel (%p317) target = $region52
      $region51: #{lstm_loss.1} parent=39 // pred_region
        _
      $region52: #{lstm_loss.1} parent=39 // pred_fallthru
        _
    $region40: #{lstm_loss.1} parent=5 // pred_fallthru
      _
    %p320 = scmp.le.s32.totalorder 2, %s11
    // Predicated region
    $region53: #{lstm_loss.1} parent=5 // pred_check
      %p321 = pneg %p320
    $region54: #{lstm_loss.1} parent=5 // pred_check_branch
      %323 = sbr.rel (%p321) target = $region56
    $region55: #{lstm_loss.1} parent=5 // pred_region
      %s324 = ssub.s32 %s11, 2
      // Predicated region
      $region57: #{lstm_loss.1} parent=55 // pred_check
        %p325 = pneg %p171
      $region58: #{lstm_loss.1} parent=55 // pred_check_branch
        %327 = sbr.rel (%p325) target = $region60
      $region59: #{lstm_loss.1} parent=55 // pred_region
        %p328 = scmp.lt.s32.totalorder %s22, 1
        %s329 = scalar_select %p328, %s22, 1
        %s330 = smul.addr %s329, 8
        %s331 = scalar_lea.vmem %s5, %s330
      $region60: #{lstm_loss.1} parent=55 // pred_fallthru
        _
    $region56: #{lstm_loss.1} parent=5 // pred_fallthru
      _
  $region6: #{lstm_loss.1} parent=0 // loop_footer
    %s15 = sadd.s32 1, %s11
  $region7: #{lstm_loss.1} parent=0 // loop_footer_branch
    %10 = sbr.rel target = $region3
  $region8: #{lstm_loss.1} parent=0 // loop_exit
    _

</llo_original>
